<compile_context>
chip_gen: v6e
topology: v6e:2x2x1
jax: 0.10.0
libtpu: 0.0.40
codegen_flags: <defaults>
</compile_context>

<pallas_src>
import jax
import jax.numpy as jnp
from jax.experimental import pallas as pl
from jax.experimental.pallas import tpu as pltpu


def _round_up(n, m):
    return ((n + m - 1) // m) * m


def mlp_kernel(x_ref, w1_ref, b1_ref, w2_ref, b2_ref, w3_ref, b3_ref, o_ref):
    # x_ref: (2, TILE_B) f32 -- batch on the 128-wide lane axis.
    x = x_ref[...]
    w1 = w1_ref[...]                                   # (32, 2)

    # Layer 1 (fan-in 2): two broadcast FMAs on the VPU.
    h1 = (w1[:, 0:1] * x[0:1, :]
          + w1[:, 1:2] * x[1:2, :]
          + b1_ref[...])                               # (32, TILE_B)
    h1 = jnp.maximum(h1, 0.0)

    # Layer 2 (32x32): MXU, f32 accumulate.
    h2 = jnp.dot(w2_ref[...], h1,
                 preferred_element_type=jnp.float32) + b2_ref[...]
    h2 = jnp.maximum(h2, 0.0)                          # (32, TILE_B)

    # Layer 3 (fan-out 1): offloaded to the (otherwise idle) MXU instead of a
    # VPU multiply + cross-sublane XLU reduce.  w3 is zero-padded to 8 rows in
    # the wrapper so the LHS is a tile-friendly (8, 32); only row 0 of the
    # (8, TILE_B) result is kept.
    y8 = jnp.dot(w3_ref[...], h2, preferred_element_type=jnp.float32)
    out = y8[0:1, :] + b3_ref[...]
    o_ref[...] = out.astype(o_ref.dtype)               # (1, TILE_B)


def mlp_forward(x, params, tile_b=4096):
    w1, b1, w2, b2, w3, b3 = params
    B = x.shape[0]

    # Lane-dense tile: multiple of 128.  Large by default (per-step overhead
    # dominates), but capped so large batches keep >= 8 grid steps so v7x's
    # two TensorCores both get work on the "parallel" batch axis.
    tile_b = max(128, _round_up(tile_b, 128))
    balanced = _round_up(pl.cdiv(max(B, 1), 8), 128)
    tile_b = max(128, min(tile_b, balanced))
    b_pad = _round_up(B, tile_b)

    # Layout plumbing (outside the kernel): batch -> lane axis, pad the tail.
    x_t = x.T                                          # (2, B)
    if b_pad != B:
        x_t = jnp.pad(x_t, ((0, 0), (0, b_pad - B)))

    w1t = w1.T                                         # (32, 2)
    b1t = b1.reshape(32, 1)
    w2t = w2.T                                         # (32, 32)
    b2t = b2.reshape(32, 1)
    # (8, 32) zero-padded layer-3 weight: row 0 = w3.T, rows 1..7 = 0.
    w3t8 = jnp.zeros((8, 32), w3.dtype).at[0, :].set(w3[:, 0])
    b3t = b3.reshape(1, 1)

    grid = (b_pad // tile_b,)

    def const(a):
        return pl.BlockSpec(a.shape, lambda i: (0, 0))

    flops = 2 * b_pad * (2 * 32 + 32 * 32 + 32 * 1)
    weight_bytes = (2 * 32 + 32 + 32 * 32 + 32 + 8 * 32 + 1) * 4
    bytes_accessed = b_pad * (2 + 1) * 4 + weight_bytes

    out_t = pl.pallas_call(
        mlp_kernel,
        out_shape=jax.ShapeDtypeStruct((1, b_pad), jnp.float32),
        grid=grid,
        in_specs=[
            pl.BlockSpec((2, tile_b), lambda i: (0, i)),   # streamed x tiles
            const(w1t), const(b1t),
            const(w2t), const(b2t),
            const(w3t8), const(b3t),                       # VMEM-resident params
        ],
        out_specs=pl.BlockSpec((1, tile_b), lambda i: (0, i)),
        compiler_params=pltpu.CompilerParams(
            dimension_semantics=("parallel",),
            vmem_limit_bytes=32 * 1024 * 1024,             # v5e default is 16 MiB
        ),
        cost_estimate=pl.CostEstimate(
            flops=flops, transcendentals=0, bytes_accessed=bytes_accessed),
    )(x_t, w1t, b1t, w2t, b2t, w3t8, b3t)

    return out_t[:, :B].T                                  # back to (B, 1)


def init_params(key):
    # Deterministic init mimicking PyTorch's default Linear init:
    # U(-1/sqrt(fan_in), 1/sqrt(fan_in)) for both weight and bias.
    def linear(key, fan_in, fan_out):
        kw, kb = jax.random.split(key)
        bound = 1.0 / (fan_in ** 0.5)
        w = jax.random.uniform(kw, (fan_in, fan_out), jnp.float32, -bound, bound)
        b = jax.random.uniform(kb, (1, fan_out), jnp.float32, -bound, bound)
        return w, b

    k1, k2, k3 = jax.random.split(key, 3)
    w1, b1 = linear(k1, 2, 32)
    w2, b2 = linear(k2, 32, 32)
    w3, b3 = linear(k3, 32, 1)
    return (w1, b1, w2, b2, w3, b3)


def mlp_reference(x, params):
    w1, b1, w2, b2, w3, b3 = params
    h1 = jnp.maximum(x @ w1 + b1, 0.0)
    h2 = jnp.maximum(h1 @ w2 + b2, 0.0)
    return h2 @ w3 + b3


if __name__ == "__main__":
    key = jax.random.PRNGKey(0)
    kx, kp = jax.random.split(key)

    batch = 8
    x = jax.random.normal(kx, (batch, 2), jnp.float32)
    params = init_params(kp)

    out = jax.block_until_ready(mlp_forward(x, params))
    ref = mlp_reference(x, params)
    assert out.shape == (batch, 1), out.shape
    assert jnp.allclose(out, ref, atol=2e-5, rtol=2e-5), (out, ref)

    # Tile-boundary-crossing batch exercising a multi-step grid (small tiles).
    batch2 = 300
    x2 = jax.random.normal(kx, (batch2, 2), jnp.float32)
    out2 = jax.block_until_ready(mlp_forward(x2, params, tile_b=128))
    ref2 = mlp_reference(x2, params)
    assert out2.shape == (batch2, 1), out2.shape
    assert jnp.allclose(out2, ref2, atol=2e-5, rtol=2e-5)

    # Larger batch exercising the default (large-tile, >=8-step) path.
    batch3 = 5000
    x3 = jax.random.normal(kx, (batch3, 2), jnp.float32)
    out3 = jax.block_until_ready(mlp_forward(x3, params))
    ref3 = mlp_reference(x3, params)
    assert out3.shape == (batch3, 1), out3.shape
    assert jnp.allclose(out3, ref3, atol=2e-5, rtol=2e-5)

    print("KERNEL_OK")
</pallas_src>

<mosaic_0001>
module attributes {stable_mosaic.version = 11 : i64} {
  func.func @mlp_kernel(%arg0: i32, %arg1: memref<2x128xf32, #tpu.memory_space<vmem>>, %arg2: memref<32x2xf32, #tpu.memory_space<vmem>>, %arg3: memref<32x1xf32, #tpu.memory_space<vmem>>, %arg4: memref<32x32xf32, #tpu.memory_space<vmem>>, %arg5: memref<32x1xf32, #tpu.memory_space<vmem>>, %arg6: memref<8x32xf32, #tpu.memory_space<vmem>>, %arg7: memref<1x1xf32, #tpu.memory_space<vmem>>, %arg8: memref<1x128xf32, #tpu.memory_space<vmem>>) attributes {dimension_semantics = [#tpu.dimension_semantics<parallel>], iteration_bounds = array<i64: 1>, scalar_prefetch = 0 : i64, scratch_operands = 0 : i64, tpu.core_type = #tpu.core_type<tc>, window_params = [{transform_indices = @transform_0, window_bounds = array<i64: 2, 128>}, {pipeline_mode = #tpu.pipeline_mode<synchronous>, transform_indices = @transform_1, window_bounds = array<i64: 32, 2>}, {pipeline_mode = #tpu.pipeline_mode<synchronous>, transform_indices = @transform_2, window_bounds = array<i64: 32, 1>}, {pipeline_mode = #tpu.pipeline_mode<synchronous>, transform_indices = @transform_3, window_bounds = array<i64: 32, 32>}, {pipeline_mode = #tpu.pipeline_mode<synchronous>, transform_indices = @transform_4, window_bounds = array<i64: 32, 1>}, {pipeline_mode = #tpu.pipeline_mode<synchronous>, transform_indices = @transform_5, window_bounds = array<i64: 8, 32>}, {pipeline_mode = #tpu.pipeline_mode<synchronous>, transform_indices = @transform_6, window_bounds = array<i64: 1, 1>}, {transform_indices = @transform_7, window_bounds = array<i64: 1, 128>}]} {
    %c0 = arith.constant 0 : index
    %c0_0 = arith.constant 0 : index
    %0 = vector.load %arg1[%c0, %c0_0] : memref<2x128xf32, #tpu.memory_space<vmem>>, vector<2x128xf32>
    %c0_1 = arith.constant 0 : index
    %c0_2 = arith.constant 0 : index
    %1 = vector.load %arg2[%c0_1, %c0_2] : memref<32x2xf32, #tpu.memory_space<vmem>>, vector<32x2xf32>
    %2 = vector.extract_strided_slice %1 {offsets = [0, 0], sizes = [32, 1], strides = [1, 1]} : vector<32x2xf32> to vector<32x1xf32>
    %3 = vector.extract_strided_slice %0 {offsets = [0, 0], sizes = [1, 128], strides = [1, 1]} : vector<2x128xf32> to vector<1x128xf32>
    %4 = vector.broadcast %2 : vector<32x1xf32> to vector<32x128xf32>
    %5 = vector.broadcast %3 : vector<1x128xf32> to vector<32x128xf32>
    %6 = arith.mulf %4, %5 : vector<32x128xf32>
    %7 = vector.extract_strided_slice %1 {offsets = [0, 1], sizes = [32, 1], strides = [1, 1]} : vector<32x2xf32> to vector<32x1xf32>
    %8 = vector.extract_strided_slice %0 {offsets = [1, 0], sizes = [1, 128], strides = [1, 1]} : vector<2x128xf32> to vector<1x128xf32>
    %9 = vector.broadcast %7 : vector<32x1xf32> to vector<32x128xf32>
    %10 = vector.broadcast %8 : vector<1x128xf32> to vector<32x128xf32>
    %11 = arith.mulf %9, %10 : vector<32x128xf32>
    %12 = arith.addf %6, %11 : vector<32x128xf32>
    %c0_3 = arith.constant 0 : index
    %c0_4 = arith.constant 0 : index
    %13 = vector.load %arg3[%c0_3, %c0_4] : memref<32x1xf32, #tpu.memory_space<vmem>>, vector<32x1xf32>
    %14 = vector.broadcast %13 : vector<32x1xf32> to vector<32x128xf32>
    %15 = arith.addf %12, %14 : vector<32x128xf32>
    %cst = arith.constant 0.000000e+00 : f32
    %16 = vector.broadcast %cst : f32 to vector<32x128xf32>
    %17 = arith.maximumf %15, %16 : vector<32x128xf32>
    %c0_5 = arith.constant 0 : index
    %c0_6 = arith.constant 0 : index
    %18 = vector.load %arg4[%c0_5, %c0_6] : memref<32x32xf32, #tpu.memory_space<vmem>>, vector<32x32xf32>
    %cst_7 = arith.constant dense<0.000000e+00> : vector<32x128xf32>
    %19 = tpu.matmul %18, %17, %cst_7 {dimension_numbers = #tpu.dot_dimension_numbers<[1], [0], [0], [1], [0, 0, 1, 1], [], []>} : vector<32x32xf32>, vector<32x128xf32>, vector<32x128xf32> -> vector<32x128xf32>
    %c0_8 = arith.constant 0 : index
    %c0_9 = arith.constant 0 : index
    %20 = vector.load %arg5[%c0_8, %c0_9] : memref<32x1xf32, #tpu.memory_space<vmem>>, vector<32x1xf32>
    %21 = vector.broadcast %20 : vector<32x1xf32> to vector<32x128xf32>
    %22 = arith.addf %19, %21 : vector<32x128xf32>
    %cst_10 = arith.constant 0.000000e+00 : f32
    %23 = vector.broadcast %cst_10 : f32 to vector<32x128xf32>
    %24 = arith.maximumf %22, %23 : vector<32x128xf32>
    %c0_11 = arith.constant 0 : index
    %c0_12 = arith.constant 0 : index
    %25 = vector.load %arg6[%c0_11, %c0_12] : memref<8x32xf32, #tpu.memory_space<vmem>>, vector<8x32xf32>
    %cst_13 = arith.constant dense<0.000000e+00> : vector<8x128xf32>
    %26 = tpu.matmul %25, %24, %cst_13 {dimension_numbers = #tpu.dot_dimension_numbers<[1], [0], [0], [1], [0, 0, 1, 1], [], []>} : vector<8x32xf32>, vector<32x128xf32>, vector<8x128xf32> -> vector<8x128xf32>
    %27 = vector.extract_strided_slice %26 {offsets = [0, 0], sizes = [1, 128], strides = [1, 1]} : vector<8x128xf32> to vector<1x128xf32>
    %c0_14 = arith.constant 0 : index
    %c0_15 = arith.constant 0 : index
    %28 = vector.load %arg7[%c0_14, %c0_15] : memref<1x1xf32, #tpu.memory_space<vmem>>, vector<1x1xf32>
    %29 = vector.broadcast %28 : vector<1x1xf32> to vector<1x128xf32>
    %30 = arith.addf %27, %29 : vector<1x128xf32>
    %c0_16 = arith.constant 0 : index
    %c0_17 = arith.constant 0 : index
    %31 = vector.load %arg8[%c0_16, %c0_17] : memref<1x128xf32, #tpu.memory_space<vmem>>, vector<1x128xf32>
    tpu.vector_store %arg8[%c0_16, %c0_17], %30 {strides = array<i32>} : memref<1x128xf32, #tpu.memory_space<vmem>>, vector<1x128xf32>,
    return
  }
  func.func @transform_0(%arg0: i32) -> (i32, i32) {
    %c0_i32 = arith.constant 0 : i32
    %c0_i32_0 = arith.constant 0 : i32
    return %c0_i32, %arg0 : i32, i32
  }
  func.func @transform_1(%arg0: i32) -> (i32, i32) {
    %c0_i32 = arith.constant 0 : i32
    %c0_i32_0 = arith.constant 0 : i32
    %c0_i32_1 = arith.constant 0 : i32
    return %c0_i32, %c0_i32_0 : i32, i32
  }
  func.func @transform_2(%arg0: i32) -> (i32, i32) {
    %c0_i32 = arith.constant 0 : i32
    %c0_i32_0 = arith.constant 0 : i32
    %c0_i32_1 = arith.constant 0 : i32
    return %c0_i32, %c0_i32_0 : i32, i32
  }
  func.func @transform_3(%arg0: i32) -> (i32, i32) {
    %c0_i32 = arith.constant 0 : i32
    %c0_i32_0 = arith.constant 0 : i32
    %c0_i32_1 = arith.constant 0 : i32
    return %c0_i32, %c0_i32_0 : i32, i32
  }
  func.func @transform_4(%arg0: i32) -> (i32, i32) {
    %c0_i32 = arith.constant 0 : i32
    %c0_i32_0 = arith.constant 0 : i32
    %c0_i32_1 = arith.constant 0 : i32
    return %c0_i32, %c0_i32_0 : i32, i32
  }
  func.func @transform_5(%arg0: i32) -> (i32, i32) {
    %c0_i32 = arith.constant 0 : i32
    %c0_i32_0 = arith.constant 0 : i32
    %c0_i32_1 = arith.constant 0 : i32
    return %c0_i32, %c0_i32_0 : i32, i32
  }
  func.func @transform_6(%arg0: i32) -> (i32, i32) {
    %c0_i32 = arith.constant 0 : i32
    %c0_i32_0 = arith.constant 0 : i32
    %c0_i32_1 = arith.constant 0 : i32
    return %c0_i32, %c0_i32_0 : i32, i32
  }
  func.func @transform_7(%arg0: i32) -> (i32, i32) {
    %c0_i32 = arith.constant 0 : i32
    %c0_i32_0 = arith.constant 0 : i32
    return %c0_i32, %arg0 : i32, i32
  }
}

</mosaic_0001>

<llo_original>
// kernel: tpu_custom_call.1
$region0: #{tpu_custom_call.1}
  #allocation0 [shape = 'u32[]', space=smem, size = 0x4, offset = 0x4, fixed_abs, tag = 'smem constant byte address 0x4 - core index']
  #allocation1 [shape = 'u32[144,128]{1,0:T(1,128)}', space=vmem, size = 0x12000, scoped, tag = 'internal scratch']
  #allocation2 [shape = 'f32[1,1]{1,0:T(1,128)S(1)}', space=vmem, size = 0x200, scoped, tag = 'scoped memory for tpu_custom_call.1']
  %s0 = inlined_call_operand.vmem [shape: f32[2,128], index: 0, kind: input, shape index: {}]
  %s1 = inlined_call_operand.vmem [shape: f32[32,2], index: 1, kind: input, shape index: {}]
  %s2 = inlined_call_operand.vmem [shape: f32[32,1], index: 2, kind: input, shape index: {}]
  %s3 = inlined_call_operand.vmem [shape: f32[32,32], index: 3, kind: input, shape index: {}]
  %s4 = inlined_call_operand.vmem [shape: f32[32,1], index: 4, kind: input, shape index: {}]
  %s5 = inlined_call_operand.vmem [shape: f32[8,32], index: 5, kind: input, shape index: {}]
  %s6 = inlined_call_operand.<no memory space> [shape: f32[1,1], index: 6, kind: input, shape index: {}]
  %s7 = inlined_call_operand.hbm [shape: f32[1,128], index: 7, kind: output, shape index: {}]
  %s8 = sld [smem:[#allocation0]]
  $region38: #{tpu_custom_call.1} parent=0
    _
  %s10 = ssub.s32 1, %s8
  %s11 = scalar_select 0, %s10, %s8
  %v12 = vstv %s6
  %13 = vst [vmem:[#allocation2] sm:$0x1] %v12
  $region1: #{tpu_custom_call.1} parent=0
    #allocation3 [shape = 'u8[512]{0}', space=vmem, size = 0x400, scoped, tag = 'output window, operand 0, single buffered']
    #allocation4 [shape = 's32[1]{0}', space=sflag, size = 0x4, scoped, tag = 'scoped memory for tpu_custom_call.1']
    %14 = vsyncpa [#allocation4], 0
    // Predicated region
    $region2: #{tpu_custom_call.1} parent=1 // pred_check
      _
    $region3: #{tpu_custom_call.1} parent=1 // pred_check_branch
      %16 = sbr.rel (0) target = $region5
    $region4: #{tpu_custom_call.1} parent=1 // pred_region
      _
    $region5: #{tpu_custom_call.1} parent=1 // pred_fallthru
      _
    // Predicated region
    $region6: #{tpu_custom_call.1} parent=1 // pred_check
      _
    $region7: #{tpu_custom_call.1} parent=1 // pred_check_branch
      %18 = sbr.rel (0) target = $region9
    $region8: #{tpu_custom_call.1} parent=1 // pred_region
      _
    $region9: #{tpu_custom_call.1} parent=1 // pred_fallthru
      _
    // Predicated region
    $region10: #{tpu_custom_call.1} parent=1 // pred_check
      _
    $region11: #{tpu_custom_call.1} parent=1 // pred_check_branch
      %20 = sbr.rel (0) target = $region13
    $region12: #{tpu_custom_call.1} parent=1 // pred_region
      _
    $region13: #{tpu_custom_call.1} parent=1 // pred_fallthru
      _
    // Predicated region
    $region14: #{tpu_custom_call.1} parent=1 // pred_check
      _
    $region15: #{tpu_custom_call.1} parent=1 // pred_check_branch
      %22 = sbr.rel (0) target = $region17
    $region16: #{tpu_custom_call.1} parent=1 // pred_region
      _
    $region17: #{tpu_custom_call.1} parent=1 // pred_fallthru
      _
    // Predicated region
    $region18: #{tpu_custom_call.1} parent=1 // pred_check
      _
    $region19: #{tpu_custom_call.1} parent=1 // pred_check_branch
      %24 = sbr.rel (0) target = $region21
    $region20: #{tpu_custom_call.1} parent=1 // pred_region
      _
    $region21: #{tpu_custom_call.1} parent=1 // pred_fallthru
      _
    // Predicated region
    $region22: #{tpu_custom_call.1} parent=1 // pred_check
      _
    $region23: #{tpu_custom_call.1} parent=1 // pred_check_branch
      %26 = sbr.rel (0) target = $region25
    $region24: #{tpu_custom_call.1} parent=1 // pred_region
      _
    $region25: #{tpu_custom_call.1} parent=1 // pred_fallthru
      _
    // Predicated region
    $region26: #{tpu_custom_call.1} parent=1 // pred_check
      _
    $region27: #{tpu_custom_call.1} parent=1 // pred_check_branch
      %28 = sbr.rel (0) target = $region29
    $region28: #{tpu_custom_call.1} parent=1 // pred_region
      _
    $region29: #{tpu_custom_call.1} parent=1 // pred_fallthru
      _
    %v29 = vld [vmem:[%s0] sm:$0x3]
    %v30 = vld [vmem:[%s1] sm:$0xff]
    %v31 = vld [vmem:[%s1 + $0x8] sm:$0xff]
    %v32 = vld [vmem:[%s1 + $0x10] sm:$0xff]
    %v33 = vld [vmem:[%s1 + $0x18] sm:$0xff]
    %35 = vset.pattern.permute.xlu0 0
    %36 = vperm.xlu0 %35, %v30
    %v37 = vpop.permute.xlu0 %36
    %40 = vset.pattern.permute.xlu0 0
    %41 = vperm.xlu0 %40, %v31
    %v42 = vpop.permute.xlu0 %41
    %45 = vset.pattern.permute.xlu0 0
    %46 = vperm.xlu0 %45, %v32
    %v47 = vpop.permute.xlu0 %46
    %50 = vset.pattern.permute.xlu0 0
    %51 = vperm.xlu0 %50, %v33
    %v52 = vpop.permute.xlu0 %51
    %v54 = vlaneseq
    %v55 = vshrl.u32 %v54, 7
    %v56 = vsub.s32 0, %v55
    %v57 = vrot.slane %v29, %v56
    %v58 = vmul.f32 %v37, %v57
    %v59 = vmul.f32 %v42, %v57
    %v60 = vmul.f32 %v47, %v57
    %v61 = vmul.f32 %v52, %v57
    %62 = vset.pattern.permute.xlu0 1
    %63 = vperm.xlu0 %62, %v30
    %v64 = vpop.permute.xlu0 %63
    %66 = vset.pattern.permute.xlu0 1
    %67 = vperm.xlu0 %66, %v31
    %v68 = vpop.permute.xlu0 %67
    %70 = vset.pattern.permute.xlu0 1
    %71 = vperm.xlu0 %70, %v32
    %v72 = vpop.permute.xlu0 %71
    %74 = vset.pattern.permute.xlu0 1
    %75 = vperm.xlu0 %74, %v33
    %v76 = vpop.permute.xlu0 %75
    %v78 = vlaneseq
    %v79 = vshrl.u32 %v78, 7
    %v80 = vsub.s32 1, %v79
    %v81 = vrot.slane %v29, %v80
    %v82 = vmul.f32 %v64, %v81
    %v83 = vmul.f32 %v68, %v81
    %v84 = vmul.f32 %v72, %v81
    %v85 = vmul.f32 %v76, %v81
    %v86 = vadd.f32 %v58, %v82
    %v87 = vadd.f32 %v59, %v83
    %v88 = vadd.f32 %v60, %v84
    %v89 = vadd.f32 %v61, %v85
    %v90 = vld [vmem:[%s2] sm:$0xff]
    %v91 = vld [vmem:[%s2 + $0x8] sm:$0xff]
    %v92 = vld [vmem:[%s2 + $0x10] sm:$0xff]
    %v93 = vld [vmem:[%s2 + $0x18] sm:$0xff]
    %95 = vset.pattern.permute.xlu0 0
    %96 = vperm.xlu0 %95, %v90
    %v97 = vpop.permute.xlu0 %96
    %100 = vset.pattern.permute.xlu0 0
    %101 = vperm.xlu0 %100, %v91
    %v102 = vpop.permute.xlu0 %101
    %105 = vset.pattern.permute.xlu0 0
    %106 = vperm.xlu0 %105, %v92
    %v107 = vpop.permute.xlu0 %106
    %110 = vset.pattern.permute.xlu0 0
    %111 = vperm.xlu0 %110, %v93
    %v112 = vpop.permute.xlu0 %111
    %v114 = vadd.f32 %v86, %v97
    %v115 = vadd.f32 %v87, %v102
    %v116 = vadd.f32 %v88, %v107
    %v117 = vadd.f32 %v89, %v112
    %v118 = vmax.f32 %v114, 0.0
    %v119 = vmax.f32 %v115, 0.0
    %v120 = vmax.f32 %v116, 0.0
    %v121 = vmax.f32 %v117, 0.0
    %v122 = vld [vmem:[%s3] sm:$0xff]
    %v123 = vld [vmem:[%s3 + $0x8] sm:$0xff]
    %v124 = vld [vmem:[%s3 + $0x10] sm:$0xff]
    %v125 = vld [vmem:[%s3 + $0x18] sm:$0xff]
    %v126 = vld [vmem:[%s4] sm:$0xff]
    %v127 = vld [vmem:[%s4 + $0x8] sm:$0xff]
    %v128 = vld [vmem:[%s4 + $0x10] sm:$0xff]
    %v129 = vld [vmem:[%s4 + $0x18] sm:$0xff]
    %131 = vset.pattern.permute.xlu0 0
    %132 = vperm.xlu0 %131, %v126
    %v133 = vpop.permute.xlu0 %132
    %136 = vset.pattern.permute.xlu0 0
    %137 = vperm.xlu0 %136, %v127
    %v138 = vpop.permute.xlu0 %137
    %141 = vset.pattern.permute.xlu0 0
    %142 = vperm.xlu0 %141, %v128
    %v143 = vpop.permute.xlu0 %142
    %146 = vset.pattern.permute.xlu0 0
    %147 = vperm.xlu0 %146, %v129
    %v148 = vpop.permute.xlu0 %147
    %vm150 = vcmask 261120
    %v152 = vsel %vm150, %v122, 0
    %v155 = vsel %vm150, %v123, 0
    %v158 = vsel %vm150, %v124, 0
    %v161 = vsel %vm150, %v125, 0
    %163 = vmatprep.subr.mxu0 0.0
    %164 = vmatpush1.msra.mxu0 0.0
    %165 = vmatprep.subr.mxu0 0.0
    %166 = vmatpush1.msra.mxu0 0.0
    %167 = vmatprep.subr.mxu0 0.0
    %168 = vmatpush1.msra.mxu0 0.0
    %169 = vmatprep.subr.mxu0 0.0
    %170 = vmatpush1.msra.mxu0 0.0
    %171 = vmatprep.subr.mxu0 0.0
    %172 = vmatpush1.msra.mxu0 0.0
    %173 = vmatprep.subr.mxu0 0.0
    %174 = vmatpush1.msra.mxu0 0.0
    %175 = vmatprep.subr.mxu0 0.0
    %176 = vmatpush1.msra.mxu0 0.0
    %177 = vmatprep.subr.mxu0 0.0
    %178 = vmatpush1.msra.mxu0 0.0
    %179 = vmatprep.subr.mxu0 0.0
    %180 = vmatpush1.msra.mxu0 0.0
    %181 = vmatprep.subr.mxu0 0.0
    %182 = vmatpush1.msra.mxu0 0.0
    %183 = vmatprep.subr.mxu0 0.0
    %184 = vmatpush1.msra.mxu0 0.0
    %185 = vmatprep.subr.mxu0 0.0
    %186 = vmatpush1.msra.mxu0 0.0
    %187 = vmatprep.subr.mxu0 0.0
    %188 = vmatpush1.msra.mxu0 %v121
    %189 = vmatprep.subr.mxu0 0.0
    %190 = vmatpush1.msra.mxu0 %v120
    %191 = vmatprep.subr.mxu0 0.0
    %192 = vmatpush1.msra.mxu0 %v119
    %193 = vmatprep.subr.mxu0 0.0
    %194 = vmatpush1.msra.mxu0 %v118
    %195 = vmatprep.subr.mxu0 0.0
    %196 = vmatpush2.msra.mxu0 0.0
    %197 = vmatprep.subr.mxu0 0.0
    %198 = vmatpush2.msra.mxu0 0.0
    %199 = vmatprep.subr.mxu0 0.0
    %200 = vmatpush2.msra.mxu0 0.0
    %201 = vmatprep.subr.mxu0 0.0
    %202 = vmatpush2.msra.mxu0 0.0
    %203 = vmatprep.subr.mxu0 0.0
    %204 = vmatpush2.msra.mxu0 0.0
    %205 = vmatprep.subr.mxu0 0.0
    %206 = vmatpush2.msra.mxu0 0.0
    %207 = vmatprep.subr.mxu0 0.0
    %208 = vmatpush2.msra.mxu0 0.0
    %209 = vmatprep.subr.mxu0 0.0
    %210 = vmatpush2.msra.mxu0 0.0
    %211 = vmatprep.subr.mxu0 0.0
    %212 = vmatpush2.msra.mxu0 0.0
    %213 = vmatprep.subr.mxu0 0.0
    %214 = vmatpush2.msra.mxu0 0.0
    %215 = vmatprep.subr.mxu0 0.0
    %216 = vmatpush2.msra.mxu0 0.0
    %217 = vmatprep.subr.mxu0 0.0
    %218 = vmatpush2.msra.mxu0 0.0
    %219 = vmatprep.subr.mxu0 0.0
    %220 = vmatpush2.msra.mxu0 0.0
    %221 = vmatprep.subr.mxu0 0.0
    %222 = vmatpush2.msra.mxu0 0.0
    %223 = vmatprep.subr.mxu0 0.0
    %224 = vmatpush2.msra.mxu0 0.0
    %225 = vmatprep.subr.mxu0 0.0
    %226 = vmatpush2.msra.mxu0 0.0
    %227 = vmatprep.mubr.f32.mxu0 0.0
    %228 = vmatmul.mubr.f32.gmra.mxu0 %v152
    %v229 = vpop.f32.mrf.mxu0
    %v230 = vadd.f32 %v133, %v229
    %v231 = vpop.f32.mrf.mxu0
    %232 = vmatprep.mubr.f32.mxu0 0.0
    %233 = vmatmul.mubr.f32.gmra.mxu0 %v155
    %v234 = vpop.f32.mrf.mxu0
    %v235 = vadd.f32 %v138, %v234
    %v236 = vpop.f32.mrf.mxu0
    %237 = vmatprep.mubr.f32.mxu0 0.0
    %238 = vmatmul.mubr.f32.gmra.mxu0 %v158
    %v239 = vpop.f32.mrf.mxu0
    %v240 = vadd.f32 %v143, %v239
    %v241 = vpop.f32.mrf.mxu0
    %242 = vmatprep.mubr.f32.mxu0 0.0
    %243 = vmatmul.mubr.f32.gmra.mxu0 %v161
    %v244 = vpop.f32.mrf.mxu0
    %v245 = vadd.f32 %v148, %v244
    %v246 = vpop.f32.mrf.mxu0
    %247 = vdwg.mxu0
    %v248 = vmax.f32 %v230, 0.0
    %v249 = vmax.f32 %v235, 0.0
    %v250 = vmax.f32 %v240, 0.0
    %v251 = vmax.f32 %v245, 0.0
    %v252 = vld [vmem:[%s5] sm:$0xff]
    %v254 = vsel %vm150, %v252, 0
    %256 = vmatprep.subr.mxu0 0.0
    %257 = vmatpush1.msra.mxu0 0.0
    %258 = vmatprep.subr.mxu0 0.0
    %259 = vmatpush1.msra.mxu0 0.0
    %260 = vmatprep.subr.mxu0 0.0
    %261 = vmatpush1.msra.mxu0 0.0
    %262 = vmatprep.subr.mxu0 0.0
    %263 = vmatpush1.msra.mxu0 0.0
    %264 = vmatprep.subr.mxu0 0.0
    %265 = vmatpush1.msra.mxu0 0.0
    %266 = vmatprep.subr.mxu0 0.0
    %267 = vmatpush1.msra.mxu0 0.0
    %268 = vmatprep.subr.mxu0 0.0
    %269 = vmatpush1.msra.mxu0 0.0
    %270 = vmatprep.subr.mxu0 0.0
    %271 = vmatpush1.msra.mxu0 0.0
    %272 = vmatprep.subr.mxu0 0.0
    %273 = vmatpush1.msra.mxu0 0.0
    %274 = vmatprep.subr.mxu0 0.0
    %275 = vmatpush1.msra.mxu0 0.0
    %276 = vmatprep.subr.mxu0 0.0
    %277 = vmatpush1.msra.mxu0 0.0
    %278 = vmatprep.subr.mxu0 0.0
    %279 = vmatpush1.msra.mxu0 0.0
    %280 = vmatprep.subr.mxu0 0.0
    %281 = vmatpush1.msra.mxu0 %v251
    %282 = vmatprep.subr.mxu0 0.0
    %283 = vmatpush1.msra.mxu0 %v250
    %284 = vmatprep.subr.mxu0 0.0
    %285 = vmatpush1.msra.mxu0 %v249
    %286 = vmatprep.subr.mxu0 0.0
    %287 = vmatpush1.msra.mxu0 %v248
    %288 = vmatprep.subr.mxu0 0.0
    %289 = vmatpush2.msra.mxu0 0.0
    %290 = vmatprep.subr.mxu0 0.0
    %291 = vmatpush2.msra.mxu0 0.0
    %292 = vmatprep.subr.mxu0 0.0
    %293 = vmatpush2.msra.mxu0 0.0
    %294 = vmatprep.subr.mxu0 0.0
    %295 = vmatpush2.msra.mxu0 0.0
    %296 = vmatprep.subr.mxu0 0.0
    %297 = vmatpush2.msra.mxu0 0.0
    %298 = vmatprep.subr.mxu0 0.0
    %299 = vmatpush2.msra.mxu0 0.0
    %300 = vmatprep.subr.mxu0 0.0
    %301 = vmatpush2.msra.mxu0 0.0
    %302 = vmatprep.subr.mxu0 0.0
    %303 = vmatpush2.msra.mxu0 0.0
    %304 = vmatprep.subr.mxu0 0.0
    %305 = vmatpush2.msra.mxu0 0.0
    %306 = vmatprep.subr.mxu0 0.0
    %307 = vmatpush2.msra.mxu0 0.0
    %308 = vmatprep.subr.mxu0 0.0
    %309 = vmatpush2.msra.mxu0 0.0
    %310 = vmatprep.subr.mxu0 0.0
    %311 = vmatpush2.msra.mxu0 0.0
    %312 = vmatprep.subr.mxu0 0.0
    %313 = vmatpush2.msra.mxu0 0.0
    %314 = vmatprep.subr.mxu0 0.0
    %315 = vmatpush2.msra.mxu0 0.0
    %316 = vmatprep.subr.mxu0 0.0
    %317 = vmatpush2.msra.mxu0 0.0
    %318 = vmatprep.subr.mxu0 0.0
    %319 = vmatpush2.msra.mxu0 0.0
    %320 = vmatprep.mubr.f32.mxu0 0.0
    %321 = vmatmul.mubr.f32.gmra.mxu0 %v254
    %v322 = vpop.f32.mrf.mxu0
    %v323 = vadd.f32 0.0, %v322
    %v324 = vpop.f32.mrf.mxu0
    %325 = vdwg.mxu0
    %v326 = vld [vmem:[#allocation2] sm:$0x1]
    %328 = vset.pattern.permute.xlu0 0
    %329 = vperm.xlu0 %328, %v326
    %v330 = vpop.permute.xlu0 %329
    %v332 = vlaneseq
    %v333 = vshrl.u32 %v332, 7
    %v334 = vsub.s32 0, %v333
    %v335 = vrot.slane %v330, %v334
    %v336 = vadd.f32 %v323, %v335
    %337 = vst [vmem:[#allocation3] sm:$0x1] %v336
    // Predicated region
    $region30: #{tpu_custom_call.1} parent=1 // pred_check
      _
    $region31: #{tpu_custom_call.1} parent=1 // pred_check_branch
      %339 = sbr.rel (0) target = $region33
    $region32: #{tpu_custom_call.1} parent=1 // pred_region
      %s341 = ssub.s32 16, 16
      %342 = vsyncadd [#allocation4], %s341
      %s344 = sshll.u32 [#allocation3], 4
      %s345 = int_to_ptr.vmem [resolvable:$true] %s344
      %347 = dma.vmem_to_hbm [thread:$0]  %s345, 16, %s7, [#allocation4]
    $region33: #{tpu_custom_call.1} parent=1 // pred_fallthru
      _
    // Predicated region
    $region34: #{tpu_custom_call.1} parent=1 // pred_check
      _
    $region35: #{tpu_custom_call.1} parent=1 // pred_check_branch
      %349 = sbr.rel (0) target = $region37
    $region36: #{tpu_custom_call.1} parent=1 // pred_region
      %350 = dma.done [#allocation4], 16
    $region37: #{tpu_custom_call.1} parent=1 // pred_fallthru
      _
    %351 = vsyncpa [#allocation4], 1

</llo_original>
